<compile_context>
chip_gen: v5e
topology: v5e:2x2
jax: 0.10.0
libtpu: 0.0.40
codegen_flags: <defaults>
</compile_context>

<pallas_src>
import functools

import jax
import jax.numpy as jnp
from jax.experimental import pallas as pl
from jax.experimental.pallas import tpu as pltpu


def _round_up(a, m):
    return (a + m - 1) // m * m


# --------------------------------------------------------------------------- #
# Phase 1: streaming scatter-sum (+ counts) over node tiles.
# Grid = (num_chunks [parallel], steps [arbitrary/reduction]).
# Output: partials[num_chunks, B, F_node + 1]  (sums | counts) per chunk.
# --------------------------------------------------------------------------- #
def _segment_sum_kernel(batch_ref, x_ref, part_ref, *, n_valid):
    c = pl.program_id(0)
    s = pl.program_id(1)
    steps = pl.num_programs(1)
    num_graphs = part_ref.shape[0]
    tile_n = x_ref.shape[0]

    @pl.when(s == 0)
    def _init():
        part_ref[...] = jnp.zeros_like(part_ref)

    # Logical (unclamped) first node of this tile; used to mask the partial last
    # tile and any clamped duplicate tiles (no HBM-side padding of x needed).
    base = (c * steps + s) * tile_n
    node_row = base + jax.lax.broadcasted_iota(jnp.int32, (1, tile_n), 1)   # [1, tile_n]
    valid_row = node_row < n_valid
    node_col = base + jax.lax.broadcasted_iota(jnp.int32, (tile_n, 1), 0)   # [tile_n, 1]
    valid_col = node_col < n_valid

    batch_ids = batch_ref[...]                                              # [1, tile_n] i32
    graph_ids = jax.lax.broadcasted_iota(jnp.int32, (num_graphs, tile_n), 0)
    onehot = jnp.where(jnp.logical_and(graph_ids == batch_ids, valid_row),
                       1.0, 0.0)                                            # [B, tile_n] f32

    # Zero garbage rows of the (possibly partial) x tile so NaN/Inf never hits MXU.
    x_tile = jnp.where(valid_col, x_ref[...], 0.0)                          # [tile_n, F]

    sums = jnp.dot(onehot, x_tile, preferred_element_type=jnp.float32)      # [B, F]  (MXU)
    counts = jnp.sum(onehot, axis=1, keepdims=True)                         # [B, 1]  (XLU)
    part_ref[...] += jnp.concatenate([sums, counts], axis=1)                # [B, F+1]


# --------------------------------------------------------------------------- #
# Phase 2: combine chunk partials, form mean, run the 2-layer MLP. Tiny.
# --------------------------------------------------------------------------- #
def _mlp_kernel(part_ref, u_ref, w1_ref, b1_ref, w2_ref, b2_ref, out_ref):
    f_aug = part_ref.shape[-1]
    total = jnp.sum(part_ref[...], axis=0)                                  # [B, F+1]
    sums = total[:, :f_aug - 1]
    counts = total[:, f_aug - 1:]
    mean = sums / jnp.maximum(counts, 1.0)                                  # scatter_mean

    cat = jnp.concatenate([u_ref[...], mean], axis=1)                       # [B, Fg+Fn]
    h = jnp.dot(cat, w1_ref[...], preferred_element_type=jnp.float32) + b1_ref[...]
    h = jnp.maximum(h, 0.0)                                                 # ReLU
    out = jnp.dot(h, w2_ref[...], preferred_element_type=jnp.float32) + b2_ref[...]
    out_ref[...] = out.astype(out_ref.dtype)


def global_model_forward(x, batch, u, w1, b1, w2, b2, *, tile_n=8192, num_chunks=2):
    """x: [N, F_node] f32, batch: [N] int32 graph id per node, u: [B, F_glob] f32.

    w1: [F_glob + F_node, H], b1: [H], w2: [H, T], b2: [T] (input-major layout).
    Only the `u is not None` branch of the PyTorch forward is implemented.
    """
    N, f_node = x.shape
    B, f_glob = u.shape
    H = w1.shape[1]
    T = w2.shape[1]
    f_aug = f_node + 1

    x = x.astype(jnp.float32)                       # no-op for f32 input
    u = u.astype(jnp.float32)
    batch2d = batch.astype(jnp.int32).reshape(1, N)  # reshape only, no HBM copy

    # Node tile: lane dim of the batch-id strip must be a multiple of 128.
    tile_n = max(128, min(_round_up(tile_n, 128), _round_up(N, 128)))
    n_blocks = pl.cdiv(N, tile_n)
    num_chunks = max(1, min(num_chunks, n_blocks))
    steps = pl.cdiv(n_blocks, num_chunks)

    def node_block(c, s):
        # Clamp so duplicated tail tiles re-read the last real block (their
        # contribution is fully masked out in-kernel via the node-index iota).
        return jnp.minimum(c * steps + s, n_blocks - 1)

    partials = pl.pallas_call(
        functools.partial(_segment_sum_kernel, n_valid=N),
        out_shape=jax.ShapeDtypeStruct((num_chunks, B, f_aug), jnp.float32),
        grid_spec=pltpu.PrefetchScalarGridSpec(
            num_scalar_prefetch=0,
            grid=(num_chunks, steps),
            in_specs=[
                pl.BlockSpec((1, tile_n), lambda c, s: (0, node_block(c, s))),      # batch ids
                pl.BlockSpec((tile_n, f_node), lambda c, s: (node_block(c, s), 0)),  # x tile
            ],
            out_specs=pl.BlockSpec((None, B, f_aug), lambda c, s: (c, 0, 0)),
        ),
        compiler_params=pltpu.CompilerParams(
            dimension_semantics=("parallel", "arbitrary"),   # chunks split across TCs (v7x)
            vmem_limit_bytes=32 * 1024 * 1024,
        ),
    )(batch2d, x)

    out = pl.pallas_call(
        _mlp_kernel,
        out_shape=jax.ShapeDtypeStruct((B, T), jnp.float32),
        grid_spec=pltpu.PrefetchScalarGridSpec(
            num_scalar_prefetch=0,
            grid=(1,),
            in_specs=[
                pl.BlockSpec((num_chunks, B, f_aug), lambda i: (0, 0, 0)),
                pl.BlockSpec((B, f_glob), lambda i: (0, 0)),
                pl.BlockSpec((f_glob + f_node, H), lambda i: (0, 0)),
                pl.BlockSpec((1, H), lambda i: (0, 0)),
                pl.BlockSpec((H, T), lambda i: (0, 0)),
                pl.BlockSpec((1, T), lambda i: (0, 0)),
            ],
            out_specs=pl.BlockSpec((B, T), lambda i: (0, 0)),
        ),
        compiler_params=pltpu.CompilerParams(
            dimension_semantics=("arbitrary",),
            vmem_limit_bytes=32 * 1024 * 1024,
        ),
    )(partials, u, w1.astype(jnp.float32), b1.reshape(1, H).astype(jnp.float32),
      w2.astype(jnp.float32), b2.reshape(1, T).astype(jnp.float32))
    return out


def _reference(x, batch, u, w1, b1, w2, b2, num_graphs):
    # Plain-JAX reference: scatter_mean + 2-layer MLP.
    sums = jax.ops.segment_sum(x, batch, num_segments=num_graphs)
    counts = jax.ops.segment_sum(jnp.ones((x.shape[0],), jnp.float32), batch,
                                 num_segments=num_graphs)
    mean = sums / jnp.maximum(counts, 1.0)[:, None]
    cat = jnp.concatenate([u, mean], axis=1)
    h = jnp.maximum(cat @ w1 + b1, 0.0)
    return h @ w2 + b2


if __name__ == "__main__":
    # Small shapes consistent with the module. N chosen non-multiple-of-tile so
    # the in-kernel partial-tile mask and the 2-chunk parallel path are exercised.
    N = 500           # total nodes
    B = 4             # number of graphs
    n_node_features = 16
    n_global_features = 8
    hiddens = 32
    n_targets = 4

    key = jax.random.PRNGKey(0)
    kx, ku, kw1, kb1, kw2, kb2 = jax.random.split(key, 6)

    x = jax.random.normal(kx, (N, n_node_features), dtype=jnp.float32)
    u = jax.random.normal(ku, (B, n_global_features), dtype=jnp.float32)
    batch = jnp.repeat(jnp.arange(B, dtype=jnp.int32), N // B)

    fan_in1 = n_global_features + n_node_features
    lim1 = 1.0 / (fan_in1 ** 0.5)
    w1 = jax.random.uniform(kw1, (fan_in1, hiddens), jnp.float32, -lim1, lim1)
    b1 = jax.random.uniform(kb1, (hiddens,), jnp.float32, -lim1, lim1)
    lim2 = 1.0 / (hiddens ** 0.5)
    w2 = jax.random.uniform(kw2, (hiddens, n_targets), jnp.float32, -lim2, lim2)
    b2 = jax.random.uniform(kb2, (n_targets,), jnp.float32, -lim2, lim2)

    ref = _reference(x, batch, u, w1, b1, w2, b2, B)

    # Multi-tile, 2-chunk (megacore) path: 4 node tiles of 128 split 2x2; the
    # last tile is partial (500 % 128 != 0) -> exercises the in-kernel mask.
    out = global_model_forward(x, batch, u, w1, b1, w2, b2, tile_n=128, num_chunks=2)
    out = jax.block_until_ready(out)
    assert out.shape == (B, n_targets)
    assert jnp.allclose(out, ref, atol=1e-4, rtol=1e-4), "mismatch vs reference (tiled path)"

    # Default large-tile path (single tile / single chunk for this small N).
    out2 = jax.block_until_ready(global_model_forward(x, batch, u, w1, b1, w2, b2))
    assert jnp.allclose(out2, ref, atol=1e-4, rtol=1e-4), "mismatch vs reference (default path)"

    print("KERNEL_OK")
</pallas_src>

<mosaic_0001>
module attributes {stable_mosaic.version = 11 : i64} {
  func.func @_segment_sum_kernel(%arg0: i32, %arg1: i32, %arg2: memref<1x128xi32, #tpu.memory_space<vmem>>, %arg3: memref<128x16xf32, #tpu.memory_space<vmem>>, %arg4: memref<1x4x17xf32, #tpu.memory_space<vmem>>) attributes {dimension_semantics = [#tpu.dimension_semantics<parallel>, #tpu.dimension_semantics<arbitrary>], iteration_bounds = array<i64: 2, 2>, scalar_prefetch = 0 : i64, scratch_operands = 0 : i64, tpu.core_type = #tpu.core_type<tc>, window_params = [{transform_indices = @transform_0, window_bounds = array<i64: 1, 128>}, {transform_indices = @transform_1, window_bounds = array<i64: 128, 16>}, {transform_indices = @transform_2, window_bounds = array<i64: 1, 4, 17>}]} {
    %c0_i32 = arith.constant 0 : i32
    %0 = arith.cmpi eq, %arg1, %c0_i32 : i32
    %1 = arith.extui %0 : i1 to i32
    %c0_i32_0 = arith.constant 0 : i32
    %2 = arith.cmpi ne, %1, %c0_i32_0 : i32
    scf.if %2 {
      %cst_15 = arith.constant 0.000000e+00 : f32
      %40 = vector.broadcast %cst_15 : f32 to vector<4x17xf32>
      %c0_16 = arith.constant 0 : index
      %c0_17 = arith.constant 0 : index
      %c0_18 = arith.constant 0 : index
      %41 = vector.load %arg4[%c0_16, %c0_17, %c0_18] : memref<1x4x17xf32, #tpu.memory_space<vmem>>, vector<1x4x17xf32>
      %42 = vector.shape_cast %41 : vector<1x4x17xf32> to vector<4x17xf32>
      %43 = vector.shape_cast %40 : vector<4x17xf32> to vector<1x4x17xf32>
      tpu.vector_store %arg4[%c0_16, %c0_17, %c0_18], %43 {strides = array<i32>} : memref<1x4x17xf32, #tpu.memory_space<vmem>>, vector<1x4x17xf32>,
    } else {
    }
    %c2_i32 = arith.constant 2 : i32
    %3 = arith.muli %arg0, %c2_i32 : i32
    %4 = arith.addi %3, %arg1 : i32
    %c128_i32 = arith.constant 128 : i32
    %5 = arith.muli %4, %c128_i32 : i32
    %6 = tpu.iota {dimensions = array<i32: 1>} : vector<1x128xi32>
    %7 = vector.broadcast %5 : i32 to vector<1x128xi32>
    %8 = arith.addi %7, %6 : vector<1x128xi32>
    %c500_i32 = arith.constant 500 : i32
    %9 = vector.broadcast %c500_i32 : i32 to vector<1x128xi32>
    %10 = arith.cmpi slt, %8, %9 : vector<1x128xi32>
    %11 = tpu.iota {dimensions = array<i32: 0>} : vector<128x1xi32>
    %12 = vector.broadcast %5 : i32 to vector<128x1xi32>
    %13 = arith.addi %12, %11 : vector<128x1xi32>
    %c500_i32_1 = arith.constant 500 : i32
    %14 = vector.broadcast %c500_i32_1 : i32 to vector<128x1xi32>
    %15 = arith.cmpi slt, %13, %14 : vector<128x1xi32>
    %c0 = arith.constant 0 : index
    %c0_2 = arith.constant 0 : index
    %16 = vector.load %arg2[%c0, %c0_2] : memref<1x128xi32, #tpu.memory_space<vmem>>, vector<1x128xi32>
    %17 = tpu.iota {dimensions = array<i32: 0>} : vector<4x128xi32>
    %18 = vector.broadcast %16 : vector<1x128xi32> to vector<4x128xi32>
    %19 = arith.cmpi eq, %17, %18 : vector<4x128xi32>
    %20 = vector.broadcast %10 : vector<1x128xi1> to vector<4x128xi1>
    %21 = arith.andi %19, %20 : vector<4x128xi1>
    %cst = arith.constant 1.000000e+00 : f32
    %cst_3 = arith.constant 0.000000e+00 : f32
    %22 = vector.broadcast %cst : f32 to vector<4x128xf32>
    %23 = vector.broadcast %cst_3 : f32 to vector<4x128xf32>
    %24 = arith.select %21, %22, %23 : vector<4x128xi1>, vector<4x128xf32>
    %c0_4 = arith.constant 0 : index
    %c0_5 = arith.constant 0 : index
    %25 = vector.load %arg3[%c0_4, %c0_5] : memref<128x16xf32, #tpu.memory_space<vmem>>, vector<128x16xf32>
    %cst_6 = arith.constant 0.000000e+00 : f32
    %26 = vector.shape_cast %15 : vector<128x1xi1> to vector<128x1xi1>
    %27 = vector.broadcast %26 : vector<128x1xi1> to vector<128x16xi1>
    %28 = vector.broadcast %cst_6 : f32 to vector<128x16xf32>
    %29 = arith.select %27, %25, %28 : vector<128x16xi1>, vector<128x16xf32>
    %cst_7 = arith.constant dense<0.000000e+00> : vector<4x16xf32>
    %30 = tpu.matmul %24, %29, %cst_7 {dimension_numbers = #tpu.dot_dimension_numbers<[1], [0], [0], [1], [0, 0, 1, 1], [], []>} : vector<4x128xf32>, vector<128x16xf32>, vector<4x16xf32> -> vector<4x16xf32>
    %cst_8 = arith.constant dense<0.000000e+00> : vector<4xf32>
    %31 = vector.multi_reduction <add>, %24, %cst_8 [1] : vector<4x128xf32> to vector<4xf32>
    %32 = vector.shape_cast %31 : vector<4xf32> to vector<4x1xf32>
    %c0_9 = arith.constant 0 : index
    %c0_10 = arith.constant 0 : index
    %c0_11 = arith.constant 0 : index
    %33 = vector.load %arg4[%c0_9, %c0_10, %c0_11] : memref<1x4x17xf32, #tpu.memory_space<vmem>>, vector<1x4x17xf32>
    %34 = vector.shape_cast %33 : vector<1x4x17xf32> to vector<4x17xf32>
    %35 = tpu.concatenate %30, %32 in 1 : vector<4x16xf32>, vector<4x1xf32> -> vector<4x17xf32>
    %36 = arith.addf %34, %35 : vector<4x17xf32>
    %c0_12 = arith.constant 0 : index
    %c0_13 = arith.constant 0 : index
    %c0_14 = arith.constant 0 : index
    %37 = vector.load %arg4[%c0_12, %c0_13, %c0_14] : memref<1x4x17xf32, #tpu.memory_space<vmem>>, vector<1x4x17xf32>
    %38 = vector.shape_cast %37 : vector<1x4x17xf32> to vector<4x17xf32>
    %39 = vector.shape_cast %36 : vector<4x17xf32> to vector<1x4x17xf32>
    tpu.vector_store %arg4[%c0_12, %c0_13, %c0_14], %39 {strides = array<i32>} : memref<1x4x17xf32, #tpu.memory_space<vmem>>, vector<1x4x17xf32>,
    return
  }
  func.func @transform_0(%arg0: i32, %arg1: i32) -> (i32, i32) {
    %c2_i32 = arith.constant 2 : i32
    %0 = arith.muli %arg0, %c2_i32 : i32
    %1 = arith.addi %0, %arg1 : i32
    %c3_i32 = arith.constant 3 : i32
    %2 = arith.minsi %1, %c3_i32 : i32
    %c0_i32 = arith.constant 0 : i32
    %c0_i32_0 = arith.constant 0 : i32
    return %c0_i32, %2 : i32, i32
  }
  func.func @transform_1(%arg0: i32, %arg1: i32) -> (i32, i32) {
    %c2_i32 = arith.constant 2 : i32
    %0 = arith.muli %arg0, %c2_i32 : i32
    %1 = arith.addi %0, %arg1 : i32
    %c3_i32 = arith.constant 3 : i32
    %2 = arith.minsi %1, %c3_i32 : i32
    %c0_i32 = arith.constant 0 : i32
    %c0_i32_0 = arith.constant 0 : i32
    return %2, %c0_i32 : i32, i32
  }
  func.func @transform_2(%arg0: i32, %arg1: i32) -> (i32, i32, i32) {
    %c0_i32 = arith.constant 0 : i32
    %c0_i32_0 = arith.constant 0 : i32
    %c0_i32_1 = arith.constant 0 : i32
    return %arg0, %c0_i32, %c0_i32_0 : i32, i32, i32
  }
}

</mosaic_0001>

<llo_original>
// kernel: tpu_custom_call.1
$region0: #{tpu_custom_call.1}
  #allocation0 [shape = 'u32[]', space=smem, size = 0x4, offset = 0x4, fixed_abs, tag = 'smem constant byte address 0x4 - core index']
  #allocation1 [shape = 'u32[72,128]{1,0:T(1,128)}', space=vmem, size = 0x9000, scoped, tag = 'internal scratch']
  %s0 = inlined_call_operand.vmem [shape: s32[1,500], index: 0, kind: input, shape index: {}]
  %s1 = inlined_call_operand.vmem [shape: f32[500,16], index: 1, kind: input, shape index: {}]
  %s2 = inlined_call_operand.hbm [shape: f32[2,4,17], index: 2, kind: output, shape index: {}]
  %s3 = sld [smem:[#allocation0]]
  $region45: #{tpu_custom_call.1} parent=0
    _
  %s5 = ssub.s32 1, %s3
  %s6 = scalar_select 0, %s5, %s3
  $region1: #{tpu_custom_call.1} parent=0
    #allocation2 [shape = 'u8[4096]{0}', space=vmem, size = 0x1000, scoped, tag = 'output window, operand 0']
    #allocation3 [shape = 's32[2]{0}', space=sflag, size = 0x8, scoped, tag = 'scoped memory for tpu_custom_call.1']
    %7 = vsyncpa [#allocation3], 0
    %s8 = scalar_lea.sflag [#allocation3], 1
    %9 = vsyncpa %s8, 0
    loop: start=0, step=1, limit=6
    $region2: #{tpu_custom_call.1} parent=1 // loop_pre_header
      _
    $region3: #{tpu_custom_call.1} parent=1 // loop_header
      %s11 = sphi 0, %s15
      %p12 = scmp.ge.s32.totalorder %s11, 6
      %s18 = sphi 0, %s30
      %s19 = sphi 0, %s26
      %s20 = sphi 0, %s18
      %s21 = sphi 0, %s19
      %s22 = sphi 0, %s20
      %s23 = sphi 0, %s21
      %s41 = sphi 0, %s43
      %s44 = sphi 0, %s41
      %s45 = sphi 0, %s44
      %s61 = sphi 0, %s45
      %s75 = sphi 0, %s77
      %s78 = sphi 0, %s75
      %s79 = sphi 0, %s78
      %s95 = sphi 0, %s79
      %s101 = sphi 0, %s103
      %s104 = sphi 0, %s101
      %s105 = sphi 0, %s104
      %s121 = sphi 0, %s105
    $region4: #{tpu_custom_call.1} parent=1 // loop_header_branch
      %14 = sbr.rel (%p12) target = $region8
    $region5: #{tpu_custom_call.1} parent=1 // loop_body
      %s16 = ssub.s32 %s11, 1
      %s17 = ssub.s32 %s11, 2
      %s24 = sadd.s32 1, %s19
      %p25 = scmp.ge.s32.totalorder %s24, 2
      %s26 = scalar_select %p25, 0, %s24
      %s27 = sadd.s32 1, %s18
      %s28 = scalar_select %p25, %s27, %s18
      %p29 = scmp.ge.s32.totalorder %s28, 2
      %s30 = scalar_select %p29, 0, %s28
      %s31 = smul.u32 %s18, 2
      %s32 = sadd.s32 %s31, %s19
      %p33 = scmp.lt.s32.totalorder %s32, 3
      %s34 = scalar_select %p33, %s32, 3
      %s35 = smul.u32 %s30, 2
      %s36 = sadd.s32 %s35, %s26
      %p37 = scmp.lt.s32.totalorder %s36, 3
      %s38 = scalar_select %p37, %s36, 3
      %s39 = ssub.s32 %s34, %s38
      %p40 = scmp.eq.s32.totalorder %s39, 0
      %s42 = sadd.s32 %s41, 1
      %s43 = scalar_select %p40, %s41, %s42
      %p46 = pneg %p40
      %p47 = scmp.eq.s32.totalorder %s11, 3
      %p48 = por %p46, %p47
      %p49 = scmp.ne.s32.totalorder %s41, %s44
      %p50 = scmp.eq.s32.totalorder %s11, 0
      %p51 = por %p49, %p50
      %p52 = scmp.ne.s32.totalorder %s41, %s44
      %p53 = scmp.eq.s32.totalorder %s16, 3
      %p54 = por %p52, %p53
      %p55 = scmp.ne.s32.totalorder %s44, %s45
      %p56 = scmp.eq.s32.totalorder %s16, 0
      %p57 = por %p55, %p56
      %p58 = scmp.ne.s32.totalorder %s44, %s45
      %p59 = scmp.eq.s32.totalorder %s17, 3
      %p60 = por %p58, %p59
      %p62 = scmp.ne.s32.totalorder %s45, %s61
      %p63 = scmp.eq.s32.totalorder %s17, 0
      %p64 = por %p62, %p63
      %s65 = smul.u32 %s18, 2
      %s66 = sadd.s32 %s65, %s19
      %p67 = scmp.lt.s32.totalorder %s66, 3
      %s68 = scalar_select %p67, %s66, 3
      %s69 = smul.u32 %s30, 2
      %s70 = sadd.s32 %s69, %s26
      %p71 = scmp.lt.s32.totalorder %s70, 3
      %s72 = scalar_select %p71, %s70, 3
      %s73 = ssub.s32 %s68, %s72
      %p74 = scmp.eq.s32.totalorder %s73, 0
      %s76 = sadd.s32 %s75, 1
      %s77 = scalar_select %p74, %s75, %s76
      %p80 = pneg %p74
      %p81 = scmp.eq.s32.totalorder %s11, 3
      %p82 = por %p80, %p81
      %p83 = scmp.ne.s32.totalorder %s75, %s78
      %p84 = scmp.eq.s32.totalorder %s11, 0
      %p85 = por %p83, %p84
      %p86 = scmp.ne.s32.totalorder %s75, %s78
      %p87 = scmp.eq.s32.totalorder %s16, 3
      %p88 = por %p86, %p87
      %p89 = scmp.ne.s32.totalorder %s78, %s79
      %p90 = scmp.eq.s32.totalorder %s16, 0
      %p91 = por %p89, %p90
      %p92 = scmp.ne.s32.totalorder %s78, %s79
      %p93 = scmp.eq.s32.totalorder %s17, 3
      %p94 = por %p92, %p93
      %p96 = scmp.ne.s32.totalorder %s79, %s95
      %p97 = scmp.eq.s32.totalorder %s17, 0
      %p98 = por %p96, %p97
      %s99 = ssub.s32 %s18, %s30
      %p100 = scmp.eq.s32.totalorder %s99, 0
      %s102 = sadd.s32 %s101, 1
      %s103 = scalar_select %p100, %s101, %s102
      %p106 = pneg %p100
      %p107 = scmp.eq.s32.totalorder %s11, 3
      %p108 = por %p106, %p107
      %p109 = scmp.ne.s32.totalorder %s101, %s104
      %p110 = scmp.eq.s32.totalorder %s11, 0
      %p111 = por %p109, %p110
      %p112 = scmp.ne.s32.totalorder %s101, %s104
      %p113 = scmp.eq.s32.totalorder %s16, 3
      %p114 = por %p112, %p113
      %p115 = scmp.ne.s32.totalorder %s104, %s105
      %p116 = scmp.eq.s32.totalorder %s16, 0
      %p117 = por %p115, %p116
      %p118 = scmp.ne.s32.totalorder %s104, %s105
      %p119 = scmp.eq.s32.totalorder %s17, 3
      %p120 = por %p118, %p119
      %p122 = scmp.ne.s32.totalorder %s105, %s121
      %p123 = scmp.eq.s32.totalorder %s17, 0
      %p124 = por %p122, %p123
      %p125 = scmp.le.s32.totalorder 1, %s11
      %p126 = scmp.lt.s32.totalorder %s11, 5
      %p127 = pnand %p125, %p126
      %p128 = pneg %p127
      // Predicated region
      $region9: #{tpu_custom_call.1} parent=5 // pred_check
        _
      $region10: #{tpu_custom_call.1} parent=5 // pred_check_branch
        %130 = sbr.rel (%p127) target = $region12
      $region11: #{tpu_custom_call.1} parent=5 // pred_region
        %s131 = ssub.s32 %s11, 1
      $region12: #{tpu_custom_call.1} parent=5 // pred_fallthru
        _
      %p132 = scmp.lt.s32.totalorder %s11, 4
      // Predicated region
      $region13: #{tpu_custom_call.1} parent=5 // pred_check
        %p133 = pneg %p132
      $region14: #{tpu_custom_call.1} parent=5 // pred_check_branch
        %135 = sbr.rel (%p133) target = $region16
      $region15: #{tpu_custom_call.1} parent=5 // pred_region
        // Predicated region
        $region17: #{tpu_custom_call.1} parent=15 // pred_check
          %p136 = pneg %p51
        $region18: #{tpu_custom_call.1} parent=15 // pred_check_branch
          %138 = sbr.rel (%p136) target = $region20
        $region19: #{tpu_custom_call.1} parent=15 // pred_region
          %s139 = smul.u32 %s18, 2
          %s140 = sadd.s32 %s139, %s19
          %p141 = scmp.lt.s32.totalorder %s140, 3
          %s142 = scalar_select %p141, %s140, 3
          %p143 = scmp.lt.s32.totalorder %s142, 3
          %s144 = scalar_select %p143, %s142, 3
          %s145 = scalar_lea.vmem %s0, %s144
          %s146 = smul.u32 %s18, 2
          %s147 = sadd.s32 %s146, %s19
          %p148 = scmp.lt.s32.totalorder %s147, 3
          %s149 = scalar_select %p148, %s147, 3
        $region20: #{tpu_custom_call.1} parent=15 // pred_fallthru
          _
        // Predicated region
        $region21: #{tpu_custom_call.1} parent=15 // pred_check
          %p150 = pneg %p85
        $region22: #{tpu_custom_call.1} parent=15 // pred_check_branch
          %152 = sbr.rel (%p150) target = $region24
        $region23: #{tpu_custom_call.1} parent=15 // pred_region
          %s153 = smul.u32 %s18, 2
          %s154 = sadd.s32 %s153, %s19
          %p155 = scmp.lt.s32.totalorder %s154, 3
          %s156 = scalar_select %p155, %s154, 3
          %s157 = smul.u32 16, %s156
          %s158 = ssub.s32 63, %s157
          %p159 = scmp.lt.s32.totalorder %s158, 16
          %s160 = scalar_select %p159, %s158, 16
          %s161 = smul.u32 8, %s160
          %p162 = scmp.lt.s32.totalorder %s157, 62
          %s163 = scalar_select %p162, %s157, 62
          %s164 = smul.addr %s163, 8
          %s165 = scalar_lea.vmem %s1, %s164
          %s166 = smul.u32 %s18, 2
          %s167 = sadd.s32 %s166, %s19
          %p168 = scmp.lt.s32.totalorder %s167, 3
          %s169 = scalar_select %p168, %s167, 3
          %s170 = smul.u32 16, %s169
          %s171 = ssub.s32 63, %s170
          %p172 = scmp.lt.s32.totalorder %s171, 16
          %s173 = scalar_select %p172, %s171, 16
          %s174 = smul.u32 8, %s173
        $region24: #{tpu_custom_call.1} parent=15 // pred_fallthru
          _
      $region16: #{tpu_custom_call.1} parent=5 // pred_fallthru
        _
      %p175 = scmp.le.s32.totalorder 1, %s11
      %p176 = scmp.lt.s32.totalorder %s11, 5
      %p177 = pnand %p175, %p176
      %p178 = pneg %p177
      // Predicated region
      $region25: #{tpu_custom_call.1} parent=5 // pred_check
        _
      $region26: #{tpu_custom_call.1} parent=5 // pred_check_branch
        %180 = sbr.rel (%p177) target = $region28
      $region27: #{tpu_custom_call.1} parent=5 // pred_region
        %s181 = ssub.s32 %s11, 1
        %s182 = smul.u32 %s20, 2
        %s183 = sadd.s32 %s182, %s21
        %p184 = scmp.lt.s32.totalorder %s183, 3
        %s185 = scalar_select %p184, %s183, 3
        %p186 = scmp.lt.s32.totalorder %s185, 3
        %s187 = scalar_select %p186, %s185, 3
        %s188 = scalar_lea.vmem %s0, %s187
        %p189 = pneg %p57
        %p190 = pneg %p54
        %s191 = smul.u32 %s20, 2
        %s192 = sadd.s32 %s191, %s21
        %p193 = scmp.lt.s32.totalorder %s192, 3
        %s194 = scalar_select %p193, %s192, 3
        %s195 = smul.u32 16, %s194
        %s196 = ssub.s32 63, %s195
        %p197 = scmp.lt.s32.totalorder %s196, 16
        %s198 = scalar_select %p197, %s196, 16
        %s199 = smul.u32 8, %s198
        %p200 = scmp.lt.s32.totalorder %s195, 62
        %s201 = scalar_select %p200, %s195, 62
        %s202 = smul.addr %s201, 8
        %s203 = scalar_lea.vmem %s1, %s202
        %p204 = pneg %p91
        %p205 = pneg %p88
        %p206 = pneg %p117
        %p207 = pneg %p114
        %s208 = sand.u32 %s104, 1
        %s209 = scalar_lea.sflag [#allocation3], %s208
        %s210 = sand.u32 %s104, 1
        %s211 = smul.addr %s210, 4
        %s212 = scalar_lea.vmem [#allocation2], %s211
        %s213 = smul.u32 %s20, 2
        %s214 = sadd.s32 %s213, %s21
        %p215 = scmp.lt.s32.totalorder %s214, 3
        %s216 = scalar_select %p215, %s214, 3
        %p217 = scmp.lt.s32.totalorder %s216, 3
        %s218 = scalar_select %p217, %s216, 3
        %s219 = scalar_lea.vmem %s0, %s218
        %s220 = smul.u32 %s20, 2
        %s221 = sadd.s32 %s220, %s21
        %p222 = scmp.lt.s32.totalorder %s221, 3
        %s223 = scalar_select %p222, %s221, 3
        %s224 = smul.u32 %s20, 2
        %s225 = sadd.s32 %s224, %s21
        %p226 = scmp.lt.s32.totalorder %s225, 3
        %s227 = scalar_select %p226, %s225, 3
        %s228 = smul.u32 16, %s227
        %s229 = ssub.s32 63, %s228
        %p230 = scmp.lt.s32.totalorder %s229, 16
        %s231 = scalar_select %p230, %s229, 16
        %s232 = smul.u32 8, %s231
        %p233 = scmp.lt.s32.totalorder %s228, 62
        %s234 = scalar_select %p233, %s228, 62
        %s235 = smul.addr %s234, 8
        %s236 = scalar_lea.vmem %s1, %s235
        %s237 = smul.u32 %s20, 2
        %s238 = sadd.s32 %s237, %s21
        %p239 = scmp.lt.s32.totalorder %s238, 3
        %s240 = scalar_select %p239, %s238, 3
        %s241 = smul.u32 16, %s240
        %s242 = ssub.s32 63, %s241
        %p243 = scmp.lt.s32.totalorder %s242, 16
        %s244 = scalar_select %p243, %s242, 16
        %s245 = smul.u32 8, %s244
        %p246 = scmp.eq.s32.totalorder %s21, 0
        // Predicated region
        $region29: #{tpu_custom_call.1} parent=27 // pred_check
          %p247 = pneg %p246
        $region30: #{tpu_custom_call.1} parent=27 // pred_check_branch
          %249 = sbr.rel (%p247) target = $region32
        $region31: #{tpu_custom_call.1} parent=27 // pred_region
          %vm250 = vcmask 134144
          %251 = vst.msk [vmem:[%s212] sm:$0xf] %vm250, 0.0
        $region32: #{tpu_custom_call.1} parent=27 // pred_fallthru
          _
        %s252 = smul.u32 %s20, 2
        %s253 = sadd.s32 %s252, %s21
        %s254 = smul.u32 %s253, 128
        %v255 = vlaneseq
        %v256 = vand.u32 %v255, 127
        %v257 = vstv %s254
        %v258 = vadd.s32 %v257, %v256
        %vm259 = vcmp.lt.s32.totalorder %v258, 500
        %v260 = vlaneseq
        %v261 = vshrl.u32 %v260, 7
        %v262 = vadd.s32 %v261, 8
        %v263 = vadd.s32 %v261, 16
        %v264 = vadd.s32 %v261, 24
        %v265 = vadd.s32 %v261, 32
        %v266 = vadd.s32 %v261, 40
        %v267 = vadd.s32 %v261, 48
        %v268 = vadd.s32 %v261, 56
        %v269 = vadd.s32 %v261, 64
        %v270 = vadd.s32 %v261, 72
        %v271 = vadd.s32 %v261, 80
        %v272 = vadd.s32 %v261, 88
        %v273 = vadd.s32 %v261, 96
        %v274 = vadd.s32 %v261, 104
        %v275 = vadd.s32 %v261, 112
        %v276 = vadd.s32 %v261, 120
        %v277 = vadd.s32 %v257, %v261
        %v278 = vadd.s32 %v257, %v262
        %v279 = vadd.s32 %v257, %v263
        %v280 = vadd.s32 %v257, %v264
        %v281 = vadd.s32 %v257, %v265
        %v282 = vadd.s32 %v257, %v266
        %v283 = vadd.s32 %v257, %v267
        %v284 = vadd.s32 %v257, %v268
        %v285 = vadd.s32 %v257, %v269
        %v286 = vadd.s32 %v257, %v270
        %v287 = vadd.s32 %v257, %v271
        %v288 = vadd.s32 %v257, %v272
        %v289 = vadd.s32 %v257, %v273
        %v290 = vadd.s32 %v257, %v274
        %v291 = vadd.s32 %v257, %v275
        %v292 = vadd.s32 %v257, %v276
        %vm293 = vcmp.lt.s32.totalorder %v277, 500
        %vm294 = vcmp.lt.s32.totalorder %v278, 500
        %vm295 = vcmp.lt.s32.totalorder %v279, 500
        %vm296 = vcmp.lt.s32.totalorder %v280, 500
        %vm297 = vcmp.lt.s32.totalorder %v281, 500
        %vm298 = vcmp.lt.s32.totalorder %v282, 500
        %vm299 = vcmp.lt.s32.totalorder %v283, 500
        %vm300 = vcmp.lt.s32.totalorder %v284, 500
        %vm301 = vcmp.lt.s32.totalorder %v285, 500
        %vm302 = vcmp.lt.s32.totalorder %v286, 500
        %vm303 = vcmp.lt.s32.totalorder %v287, 500
        %vm304 = vcmp.lt.s32.totalorder %v288, 500
        %vm305 = vcmp.lt.s32.totalorder %v289, 500
        %vm306 = vcmp.lt.s32.totalorder %v290, 500
        %vm307 = vcmp.lt.s32.totalorder %v291, 500
        %vm308 = vcmp.lt.s32.totalorder %v292, 500
        %v309 = vld [vmem:[%s219] sm:$0x1]
        %v310 = vperm.slane %v309, 0
        %vm311 = vcmp.eq.s32.totalorder %v261, %v310
        %v312 = vsel %vm259, 1, 0
        %vm313 = vcmp.eq.s32.totalorder %v312, 1
        %vm314 = vmand %vm311, %vm313
        %v315 = vsel %vm314, 1.0, 0.0
        %v316 = vld [vmem:[%s236] sm:$0xff]
        %v317 = vld [vmem:[%s236 + $0x8] sm:$0xff]
        %v318 = vld [vmem:[%s236 + $0x10] sm:$0xff]
        %v319 = vld [vmem:[%s236 + $0x18] sm:$0xff]
        %v320 = vld [vmem:[%s236 + $0x20] sm:$0xff]
        %v321 = vld [vmem:[%s236 + $0x28] sm:$0xff]
        %v322 = vld [vmem:[%s236 + $0x30] sm:$0xff]
        %v323 = vld [vmem:[%s236 + $0x38] sm:$0xff]
        %v324 = vld [vmem:[%s236 + $0x40] sm:$0xff]
        %v325 = vld [vmem:[%s236 + $0x48] sm:$0xff]
        %v326 = vld [vmem:[%s236 + $0x50] sm:$0xff]
        %v327 = vld [vmem:[%s236 + $0x58] sm:$0xff]
        %v328 = vld [vmem:[%s236 + $0x60] sm:$0xff]
        %v329 = vld [vmem:[%s236 + $0x68] sm:$0xff]
        %v330 = vld [vmem:[%s236 + $0x70] sm:$0xff]
        %v331 = vld [vmem:[%s236 + $0x78] sm:$0xff]
        %v332 = vsel %vm293, 1, 0
        %v333 = vsel %vm294, 1, 0
        %v334 = vsel %vm295, 1, 0
        %v335 = vsel %vm296, 1, 0
        %v336 = vsel %vm297, 1, 0
        %v337 = vsel %vm298, 1, 0
        %v338 = vsel %vm299, 1, 0
        %v339 = vsel %vm300, 1, 0
        %v340 = vsel %vm301, 1, 0
        %v341 = vsel %vm302, 1, 0
        %v342 = vsel %vm303, 1, 0
        %v343 = vsel %vm304, 1, 0
        %v344 = vsel %vm305, 1, 0
        %v345 = vsel %vm306, 1, 0
        %v346 = vsel %vm307, 1, 0
        %v347 = vsel %vm308, 1, 0
        %vm348 = vcmp.eq.s32.totalorder %v332, 1
        %vm349 = vcmp.eq.s32.totalorder %v333, 1
        %vm350 = vcmp.eq.s32.totalorder %v334, 1
        %vm351 = vcmp.eq.s32.totalorder %v335, 1
        %vm352 = vcmp.eq.s32.totalorder %v336, 1
        %vm353 = vcmp.eq.s32.totalorder %v337, 1
        %vm354 = vcmp.eq.s32.totalorder %v338, 1
        %vm355 = vcmp.eq.s32.totalorder %v339, 1
        %vm356 = vcmp.eq.s32.totalorder %v340, 1
        %vm357 = vcmp.eq.s32.totalorder %v341, 1
        %vm358 = vcmp.eq.s32.totalorder %v342, 1
        %vm359 = vcmp.eq.s32.totalorder %v343, 1
        %vm360 = vcmp.eq.s32.totalorder %v344, 1
        %vm361 = vcmp.eq.s32.totalorder %v345, 1
        %vm362 = vcmp.eq.s32.totalorder %v346, 1
        %vm363 = vcmp.eq.s32.totalorder %v347, 1
        %v364 = vsel %vm348, %v316, 0.0
        %v365 = vsel %vm349, %v317, 0.0
        %v366 = vsel %vm350, %v318, 0.0
        %v367 = vsel %vm351, %v319, 0.0
        %v368 = vsel %vm352, %v320, 0.0
        %v369 = vsel %vm353, %v321, 0.0
        %v370 = vsel %vm354, %v322, 0.0
        %v371 = vsel %vm355, %v323, 0.0
        %v372 = vsel %vm356, %v324, 0.0
        %v373 = vsel %vm357, %v325, 0.0
        %v374 = vsel %vm358, %v326, 0.0
        %v375 = vsel %vm359, %v327, 0.0
        %v376 = vsel %vm360, %v328, 0.0
        %v377 = vsel %vm361, %v329, 0.0
        %v378 = vsel %vm362, %v330, 0.0
        %v379 = vsel %vm363, %v331, 0.0
        %380 = vmatpush.msra.mxu0 %v379
        %381 = vmatpush.msra.mxu0 %v378
        %382 = vmatpush.msra.mxu0 %v377
        %383 = vmatpush.msra.mxu0 %v376
        %384 = vmatpush.msra.mxu0 %v375
        %385 = vmatpush.msra.mxu0 %v374
        %386 = vmatpush.msra.mxu0 %v373
        %387 = vmatpush.msra.mxu0 %v372
        %388 = vmatpush.msra.mxu0 %v371
        %389 = vmatpush.msra.mxu0 %v370
        %390 = vmatpush.msra.mxu0 %v369
        %391 = vmatpush.msra.mxu0 %v368
        %392 = vmatpush.msra.mxu0 %v367
        %393 = vmatpush.msra.mxu0 %v366
        %394 = vmatpush.msra.mxu0 %v365
        %395 = vmatpush.msra.mxu0 %v364
        %396 = vmatmul.f32.gmra.mxu0 %v315
        %v397 = vpop.f32.mrf.mxu0
        %v398 = vadd.f32 0.0, %v397
        %399 = vdwg.mxu0
        %vm400 = vcmask 1043456
        %v401 = vsel %vm400, %v315, 0.0
        %402 = vadd.xlane.f32.xlu0 %v401
        %v403 = vpop.xlane.xlu0 %402
        %v404 = vld [vmem:[%s212] sm:$0xf]
        %vm405 = vcmask 130048
        %v406 = vsel %vm405, %v398, %v403
        %v407 = vadd.f32 %v404, %v406
        %vm408 = vcmask 134144
        %409 = vst.msk [vmem:[%s212] sm:$0xf] %vm408, %v407
        %s410 = sand.u32 %s104, 1
        %s411 = scalar_lea.sflag [#allocation3], %s410
        %s412 = sand.u32 %s104, 1
        %s413 = smul.addr %s412, 4
        %s414 = scalar_lea.vmem [#allocation2], %s413
        // Predicated region
        $region33: #{tpu_custom_call.1} parent=27 // pred_check
          %p415 = pneg %p114
        $region34: #{tpu_custom_call.1} parent=27 // pred_check_branch
          %417 = sbr.rel (%p415) target = $region36
        $region35: #{tpu_custom_call.1} parent=27 // pred_region
          %419 = vsyncadd %s411, 0
          %s420 = smul.addr %s20, 4
          %s421 = scalar_lea.hbm %s2, %s420
          %s423 = sshll.u32 %s414, 4
          %s424 = int_to_ptr.vmem [resolvable:$true] %s423
          %s425 = sshll.u32 %s421, 4
          %s426 = int_to_ptr.hbm [resolvable:$true] %s425
          %428 = dma.vmem_to_hbm [thread:$0]  %s424, 64, %s426, %s411
        $region36: #{tpu_custom_call.1} parent=27 // pred_fallthru
          _
      $region28: #{tpu_custom_call.1} parent=5 // pred_fallthru
        _
      %p429 = scmp.le.s32.totalorder 2, %s11
      // Predicated region
      $region37: #{tpu_custom_call.1} parent=5 // pred_check
        %p430 = pneg %p429
      $region38: #{tpu_custom_call.1} parent=5 // pred_check_branch
        %432 = sbr.rel (%p430) target = $region40
      $region39: #{tpu_custom_call.1} parent=5 // pred_region
        %s433 = ssub.s32 %s11, 2
        // Predicated region
        $region41: #{tpu_custom_call.1} parent=39 // pred_check
          %p434 = pneg %p120
        $region42: #{tpu_custom_call.1} parent=39 // pred_check_branch
          %436 = sbr.rel (%p434) target = $region44
        $region43: #{tpu_custom_call.1} parent=39 // pred_region
          %s437 = sand.u32 %s105, 1
          %s438 = scalar_lea.sflag [#allocation3], %s437
          %s439 = sand.u32 %s105, 1
          %s440 = smul.addr %s439, 4
          %s441 = scalar_lea.vmem [#allocation2], %s440
          %443 = dma.done %s438, 64
        $region44: #{tpu_custom_call.1} parent=39 // pred_fallthru
          _
      $region40: #{tpu_custom_call.1} parent=5 // pred_fallthru
        _
    $region6: #{tpu_custom_call.1} parent=1 // loop_footer
      %s15 = sadd.s32 1, %s11
    $region7: #{tpu_custom_call.1} parent=1 // loop_footer_branch
      %10 = sbr.rel target = $region3
    $region8: #{tpu_custom_call.1} parent=1 // loop_exit
      _
    %444 = vsyncpa [#allocation3], 1
    %s445 = scalar_lea.sflag [#allocation3], 1
    %446 = vsyncpa %s445, 1

</llo_original>
